<compile_context>
chip_gen: v5e
topology: v5e:2x2
jax: 0.10.0
libtpu: 0.0.40
codegen_flags: <defaults>
</compile_context>

<pallas_src>
import math
import functools

import jax
import jax.numpy as jnp
from jax import lax
from jax.experimental import pallas as pl
from jax.experimental.pallas import tpu as pltpu


# ---------------------------------------------------------------------------
# Host-side helpers
# ---------------------------------------------------------------------------
def _round_up(n, m):
    return ((n + m - 1) // m) * m


def _pow2_block(n, target):
    """Largest power-of-two block <= target (not wastefully larger than n).

    Floor of 16 keeps bf16 sublane packing tile-aligned; power-of-two blocks
    guarantee every block divides the padded sequence length.
    """
    blk = 16
    while blk * 2 <= target and blk < n:
        blk *= 2
    return blk


def _vmem_limit_bytes():
    """Generation-aware VMEM budget: ~75% of physical, capped at 100 MiB.

    v5e/v6e (128 MiB) -> 96 MiB; v7x (64 MiB) -> 48 MiB.
    """
    cap = 128 * 1024 * 1024
    try:
        cap = int(pltpu.get_tpu_info().vmem_capacity_bytes)
    except Exception:
        pass
    return max(32 * 1024 * 1024, min(cap * 3 // 4, 100 * 1024 * 1024))


# ---------------------------------------------------------------------------
# Kernel 1: fused, K-tiled QKV projection -> head-leading (B, H, T, dim_head)
# ---------------------------------------------------------------------------
def _qkv_proj_kernel(x_ref, w_ref, q_ref, k_ref, v_ref, acc_ref, *,
                     heads_count, dim_head, dim_out, scale, compute_dtype):
    kk = pl.program_id(2)

    @pl.when(kk == 0)
    def _init():
        acc_ref[...] = jnp.zeros_like(acc_ref)

    x = x_ref[0].astype(compute_dtype)            # (block_t, block_kin)
    w = w_ref[...].astype(compute_dtype)          # (block_kin, 3*dim_out)
    acc_ref[...] += jnp.dot(x, w, preferred_element_type=jnp.float32)

    @pl.when(kk == pl.num_programs(2) - 1)
    def _finalize():
        qkv = acc_ref[...]                        # (block_t, 3*dim_out) f32
        # Head-leading writes: one (block_t, dim_head) lane slice per head per
        # projection, paid once per token tile (not per kv step).
        for h in range(heads_count):
            hs = h * dim_head
            q_ref[0, h] = (qkv[:, hs:hs + dim_head] * scale).astype(q_ref.dtype)
            k_ref[0, h] = qkv[:, dim_out + hs:dim_out + hs + dim_head].astype(k_ref.dtype)
            v_ref[0, h] = qkv[:, 2 * dim_out + hs:2 * dim_out + hs + dim_head].astype(v_ref.dtype)


# ---------------------------------------------------------------------------
# Kernel 2: triangular-grid flash attention + fused output projection
# ---------------------------------------------------------------------------
def _flash_attn_kernel(qi_map_ref, ki_map_ref,
                       q_ref, k_ref, v_ref, wout_ref, bout_ref, o_ref,
                       m_ref, l_ref, acc_ref, *,
                       heads_count, dim_head, dim_out, block_q, block_k,
                       compute_dtype, approx_recip):
    step = pl.program_id(1)
    qi = qi_map_ref[step]                         # scalar-prefetched q-tile index
    ki = ki_map_ref[step]                         # scalar-prefetched kv-tile index
    q_start = qi * block_q
    kv_start = ki * block_k
    last_k = (q_start + block_q - 1) // block_k   # last kv tile for this q tile

    @pl.when(ki == 0)
    def _init():
        m_ref[...] = jnp.full_like(m_ref, -jnp.inf)
        l_ref[...] = jnp.zeros_like(l_ref)
        acc_ref[...] = jnp.zeros_like(acc_ref)

    def _attn_step(masked):
        if masked:
            # Causal mask, shared by all heads (only built on diagonal tiles).
            row = q_start + lax.broadcasted_iota(jnp.int32, (block_q, block_k), 0)
            col = kv_start + lax.broadcasted_iota(jnp.int32, (block_q, block_k), 1)
            above_diag = col > row
        for h in range(heads_count):
            q_h = q_ref[0, h]                     # (block_q, dim_head) — full tiles,
            k_h = k_ref[0, h]                     # no lane-dim head slicing.
            v_h = v_ref[0, h]

            # q_h @ k_h^T, f32 accumulation (q already carries 1/sqrt(Dh)).
            s = lax.dot_general(q_h, k_h, (((1,), (1,)), ((), ())),
                                preferred_element_type=jnp.float32)   # (bq, bk)
            if masked:
                s = jnp.where(above_diag, jnp.float32(-1e30), s)

            m_prev = m_ref[h]                                         # (bq, 1)
            m_new = jnp.maximum(m_prev, jnp.max(s, axis=-1, keepdims=True))
            alpha = jnp.exp(m_prev - m_new)
            p = jnp.exp(s - m_new)                                    # (bq, bk) f32
            l_ref[h] = alpha * l_ref[h] + jnp.sum(p, axis=-1, keepdims=True)
            acc_ref[h] = alpha * acc_ref[h] + jnp.dot(
                p.astype(compute_dtype), v_h, preferred_element_type=jnp.float32)
            m_ref[h] = m_new

    # Mask only when this kv tile actually intersects the causal diagonal;
    # interior (fully-unmasked) tiles skip the iota/compare/select entirely.
    needs_mask = (kv_start + block_k - 1) > q_start

    @pl.when(needs_mask)
    def _masked():
        _attn_step(True)

    @pl.when(jnp.logical_not(needs_mask))
    def _unmasked():
        _attn_step(False)

    @pl.when(ki == last_k)
    def _finalize():
        # Deferred softmax normalization + per-head output projection:
        # out = sum_h (acc_h / l_h) @ W_out[h]  (avoids lane-dim head concat).
        out = jnp.zeros((block_q, dim_out), jnp.float32)
        for h in range(heads_count):
            inv_l = pl.reciprocal(l_ref[h], approx=approx_recip)      # (bq, 1)
            ctx_h = (acc_ref[h] * inv_l).astype(compute_dtype)        # (bq, Dh)
            out = out + jnp.dot(ctx_h, wout_ref[h],
                                preferred_element_type=jnp.float32)
        out = out + bout_ref[...]                                     # (1, dim_out) bcast
        o_ref[0] = out.astype(o_ref.dtype)


# ---------------------------------------------------------------------------
# Host-side wrapper
# ---------------------------------------------------------------------------
def attention_layer(payload, w_qkv, w_out, b_out, *, heads_count,
                    compute_dtype=jnp.bfloat16,
                    block_q_target=None, block_k_target=256, block_t_target=256):
    """payload: (B, T, dim_in); w_qkv: (dim_in, 3*dim_out);
    w_out: (dim_out, dim_out); b_out: (dim_out,).  Eval-mode forward."""
    B, T, dim_in = payload.shape
    dim_out = w_out.shape[1]
    assert dim_out % heads_count == 0
    dim_head = dim_out // heads_count
    scale = 1.0 / math.sqrt(dim_head)

    vmem_limit = _vmem_limit_bytes()
    if block_q_target is None:
        # Bigger q tiles halve K/V re-streaming; stay conservative when VMEM is
        # small (v7x 64 MiB physical).
        block_q_target = 512 if vmem_limit >= 64 * 1024 * 1024 else 256

    block_t = _pow2_block(T, block_t_target)
    block_q = _pow2_block(T, block_q_target)
    block_k = _pow2_block(T, block_k_target)

    # Pad tokens so every (power-of-two) block divides the sequence.  Padded key
    # rows lie above the causal diagonal of every real query row (always masked);
    # padded query rows are sliced off at the end.
    t_pad = _round_up(T, max(block_t, block_q, block_k))

    # K-tile the projection over dim_in so the weight block stays bounded.
    if dim_in <= 512:
        block_kin, din_pad = dim_in, dim_in
    else:
        block_kin = 512
        din_pad = _round_up(dim_in, block_kin)

    x = payload
    if t_pad != T or din_pad != dim_in:
        x = jnp.pad(x, ((0, 0), (0, t_pad - T), (0, din_pad - dim_in)))
    w_qkv_c = w_qkv.astype(compute_dtype)
    if din_pad != dim_in:
        w_qkv_c = jnp.pad(w_qkv_c, ((0, din_pad - dim_in), (0, 0)))
    # Head-leading output projection weight: (H, dim_head, dim_out).
    w_out_r = w_out.reshape(heads_count, dim_head, dim_out).astype(compute_dtype)
    b_out2d = b_out.reshape(1, dim_out).astype(jnp.float32)

    # ---- Kernel 1: K-tiled QKV projection ----
    qkv_kernel = functools.partial(
        _qkv_proj_kernel, heads_count=heads_count, dim_head=dim_head,
        dim_out=dim_out, scale=scale, compute_dtype=compute_dtype)

    q, k, v = pl.pallas_call(
        qkv_kernel,
        out_shape=tuple(
            jax.ShapeDtypeStruct((B, heads_count, t_pad, dim_head), compute_dtype)
            for _ in range(3)),
        grid_spec=pltpu.PrefetchScalarGridSpec(
            num_scalar_prefetch=0,
            grid=(B, t_pad // block_t, din_pad // block_kin),
            in_specs=[
                pl.BlockSpec((1, block_t, block_kin), lambda b, t, kk: (b, t, kk)),
                pl.BlockSpec((block_kin, 3 * dim_out), lambda b, t, kk: (kk, 0)),
            ],
            out_specs=[
                pl.BlockSpec((1, heads_count, block_t, dim_head),
                             lambda b, t, kk: (b, 0, t, 0))
                for _ in range(3)
            ],
            scratch_shapes=[pltpu.VMEM((block_t, 3 * dim_out), jnp.float32)],
        ),
        compiler_params=pltpu.CompilerParams(
            dimension_semantics=("parallel", "parallel", "arbitrary"),
            vmem_limit_bytes=vmem_limit),
    )(x, w_qkv_c)

    # ---- Kernel 2: triangular-grid flash attention + output projection ----
    num_q = t_pad // block_q
    qi_steps, ki_steps = [], []
    for qi in range(num_q):
        last_k = (qi * block_q + block_q - 1) // block_k
        for ki in range(last_k + 1):          # above-diagonal pairs never enumerated
            qi_steps.append(qi)
            ki_steps.append(ki)
    qi_arr = jnp.asarray(qi_steps, dtype=jnp.int32)
    ki_arr = jnp.asarray(ki_steps, dtype=jnp.int32)
    num_steps = len(qi_steps)

    flash_kernel = functools.partial(
        _flash_attn_kernel,
        heads_count=heads_count, dim_head=dim_head, dim_out=dim_out,
        block_q=block_q, block_k=block_k,
        compute_dtype=compute_dtype,
        # Approximate (EUP) reciprocal only when the output itself is low precision.
        approx_recip=(payload.dtype == jnp.bfloat16))

    out = pl.pallas_call(
        flash_kernel,
        out_shape=jax.ShapeDtypeStruct((B, t_pad, dim_out), payload.dtype),
        grid_spec=pltpu.PrefetchScalarGridSpec(
            num_scalar_prefetch=2,
            grid=(B, num_steps),
            in_specs=[
                pl.BlockSpec((1, heads_count, block_q, dim_head),
                             lambda b, s, qi_m, ki_m: (b, 0, qi_m[s], 0)),
                pl.BlockSpec((1, heads_count, block_k, dim_head),
                             lambda b, s, qi_m, ki_m: (b, 0, ki_m[s], 0)),
                pl.BlockSpec((1, heads_count, block_k, dim_head),
                             lambda b, s, qi_m, ki_m: (b, 0, ki_m[s], 0)),
                pl.BlockSpec((heads_count, dim_head, dim_out),
                             lambda b, s, qi_m, ki_m: (0, 0, 0)),
                pl.BlockSpec((1, dim_out), lambda b, s, qi_m, ki_m: (0, 0)),
            ],
            out_specs=pl.BlockSpec((1, block_q, dim_out),
                                   lambda b, s, qi_m, ki_m: (b, qi_m[s], 0)),
            scratch_shapes=[
                pltpu.VMEM((heads_count, block_q, 1), jnp.float32),        # running max
                pltpu.VMEM((heads_count, block_q, 1), jnp.float32),        # running denom
                pltpu.VMEM((heads_count, block_q, dim_head), jnp.float32), # context acc
            ],
        ),
        compiler_params=pltpu.CompilerParams(
            # TODO(synk): for B == 1 on v7x (2 TensorCores), split q tiles onto a
            # second 'parallel' axis so both cores get work.
            dimension_semantics=("parallel", "arbitrary"),
            vmem_limit_bytes=vmem_limit),
    )(qi_arr, ki_arr, q, k, v, w_out_r, b_out2d)

    if t_pad != T:
        out = out[:, :T, :]
    return out


def attention_reference(payload, w_qkv, w_out, b_out, *, heads_count):
    """Plain-JAX f32 reference mirroring the PyTorch forward (eval mode)."""
    B, T, _ = payload.shape
    dim_out = w_out.shape[1]
    dim_head = dim_out // heads_count
    qkv = payload @ w_qkv
    q, k, v = jnp.split(qkv, 3, axis=-1)

    def split_heads(t):
        return t.reshape(B, T, heads_count, dim_head).transpose(0, 2, 1, 3)

    q, k, v = split_heads(q), split_heads(k), split_heads(v)
    scores = (q @ jnp.swapaxes(k, -2, -1)) / math.sqrt(dim_head)
    mask = jnp.triu(jnp.ones((T, T), bool), k=1)
    scores = jnp.where(mask, -jnp.inf, scores)
    w = jax.nn.softmax(scores, axis=-1)
    ctx = (w @ v).transpose(0, 2, 1, 3).reshape(B, T, dim_out)
    return ctx @ w_out + b_out


if __name__ == "__main__":
    # Small, module-consistent shapes.
    batch = 2
    seq = 8
    dim_in = 32
    dim_out = 32
    heads_count = 4

    key = jax.random.PRNGKey(0)
    k_x, k_qkv, k_out, k_b = jax.random.split(key, 4)

    x = jax.random.normal(k_x, (batch, seq, dim_in), dtype=jnp.float32)
    lim_qkv = 1.0 / math.sqrt(dim_in)
    w_qkv = jax.random.uniform(k_qkv, (dim_in, 3 * dim_out),
                               minval=-lim_qkv, maxval=lim_qkv, dtype=jnp.float32)
    lim_out = 1.0 / math.sqrt(dim_out)
    w_out = jax.random.uniform(k_out, (dim_out, dim_out),
                               minval=-lim_out, maxval=lim_out, dtype=jnp.float32)
    b_out = jax.random.uniform(k_b, (dim_out,),
                               minval=-lim_out, maxval=lim_out, dtype=jnp.float32)

    ref = attention_reference(x, w_qkv, w_out, b_out, heads_count=heads_count)

    # Full-precision path: must match the reference tightly.
    out_f32 = attention_layer(x, w_qkv, w_out, b_out, heads_count=heads_count,
                              compute_dtype=jnp.float32)
    out_f32 = jax.block_until_ready(out_f32)
    assert out_f32.shape == (batch, seq, dim_out)
    assert jnp.allclose(out_f32, ref, atol=1e-4, rtol=1e-4), "f32 mismatch vs reference"

    # Production path: bf16 MXU operands, f32 accumulation (looser tolerance).
    out_bf16 = attention_layer(x, w_qkv, w_out, b_out, heads_count=heads_count,
                               compute_dtype=jnp.bfloat16)
    out_bf16 = jax.block_until_ready(out_bf16)
    assert out_bf16.shape == (batch, seq, dim_out)
    assert jnp.allclose(out_bf16, ref, atol=3e-2, rtol=3e-2), "bf16 mismatch vs reference"

    print("KERNEL_OK")
</pallas_src>

<mosaic_0001>
module attributes {stable_mosaic.version = 11 : i64} {
  func.func @_qkv_proj_kernel(%arg0: i32, %arg1: i32, %arg2: i32, %arg3: memref<1x16x32xf32, #tpu.memory_space<vmem>>, %arg4: memref<32x96xf32, #tpu.memory_space<vmem>>, %arg5: memref<1x4x16x8xf32, #tpu.memory_space<vmem>>, %arg6: memref<1x4x16x8xf32, #tpu.memory_space<vmem>>, %arg7: memref<1x4x16x8xf32, #tpu.memory_space<vmem>>, %arg8: memref<16x96xf32, #tpu.memory_space<vmem>>) attributes {dimension_semantics = [#tpu.dimension_semantics<parallel>, #tpu.dimension_semantics<parallel>, #tpu.dimension_semantics<arbitrary>], iteration_bounds = array<i64: 2, 1, 1>, scalar_prefetch = 0 : i64, scratch_operands = 1 : i64, tpu.core_type = #tpu.core_type<tc>, window_params = [{transform_indices = @transform_0, window_bounds = array<i64: 1, 16, 32>}, {transform_indices = @transform_1, window_bounds = array<i64: 32, 96>}, {transform_indices = @transform_2, window_bounds = array<i64: 1, 4, 16, 8>}, {transform_indices = @transform_3, window_bounds = array<i64: 1, 4, 16, 8>}, {transform_indices = @transform_4, window_bounds = array<i64: 1, 4, 16, 8>}]} {
    %c0_i32 = arith.constant 0 : i32
    %0 = arith.cmpi eq, %arg2, %c0_i32 : i32
    %1 = arith.extui %0 : i1 to i32
    %c0_i32_0 = arith.constant 0 : i32
    %2 = arith.cmpi ne, %1, %c0_i32_0 : i32
    scf.if %2 {
      %cst_11 = arith.constant 0.000000e+00 : f32
      %13 = vector.broadcast %cst_11 : f32 to vector<16x96xf32>
      %c0_12 = arith.constant 0 : index
      %c0_13 = arith.constant 0 : index
      %14 = vector.load %arg8[%c0_12, %c0_13] : memref<16x96xf32, #tpu.memory_space<vmem>>, vector<16x96xf32>
      tpu.vector_store %arg8[%c0_12, %c0_13], %13 {strides = array<i32>} : memref<16x96xf32, #tpu.memory_space<vmem>>, vector<16x96xf32>,
    } else {
    }
    %c0 = arith.constant 0 : index
    %c0_1 = arith.constant 0 : index
    %c0_2 = arith.constant 0 : index
    %3 = vector.load %arg3[%c0, %c0_1, %c0_2] : memref<1x16x32xf32, #tpu.memory_space<vmem>>, vector<1x16x32xf32>
    %4 = vector.shape_cast %3 : vector<1x16x32xf32> to vector<16x32xf32>
    %c0_3 = arith.constant 0 : index
    %c0_4 = arith.constant 0 : index
    %5 = vector.load %arg4[%c0_3, %c0_4] : memref<32x96xf32, #tpu.memory_space<vmem>>, vector<32x96xf32>
    %c0_5 = arith.constant 0 : index
    %c0_6 = arith.constant 0 : index
    %6 = vector.load %arg8[%c0_5, %c0_6] : memref<16x96xf32, #tpu.memory_space<vmem>>, vector<16x96xf32>
    %cst = arith.constant dense<0.000000e+00> : vector<16x96xf32>
    %7 = tpu.matmul %4, %5, %cst {dimension_numbers = #tpu.dot_dimension_numbers<[1], [0], [0], [1], [0, 0, 1, 1], [], []>} : vector<16x32xf32>, vector<32x96xf32>, vector<16x96xf32> -> vector<16x96xf32>
    %8 = arith.addf %6, %7 : vector<16x96xf32>
    %c0_7 = arith.constant 0 : index
    %c0_8 = arith.constant 0 : index
    %9 = vector.load %arg8[%c0_7, %c0_8] : memref<16x96xf32, #tpu.memory_space<vmem>>, vector<16x96xf32>
    tpu.vector_store %arg8[%c0_7, %c0_8], %8 {strides = array<i32>} : memref<16x96xf32, #tpu.memory_space<vmem>>, vector<16x96xf32>,
    %c0_i32_9 = arith.constant 0 : i32
    %10 = arith.cmpi eq, %arg2, %c0_i32_9 : i32
    %11 = arith.extui %10 : i1 to i32
    %c0_i32_10 = arith.constant 0 : i32
    %12 = arith.cmpi ne, %11, %c0_i32_10 : i32
    scf.if %12 {
      %c0_11 = arith.constant 0 : index
      %c0_12 = arith.constant 0 : index
      %13 = vector.load %arg8[%c0_11, %c0_12] : memref<16x96xf32, #tpu.memory_space<vmem>>, vector<16x96xf32>
      %14 = vector.extract_strided_slice %13 {offsets = [0, 0], sizes = [16, 8], strides = [1, 1]} : vector<16x96xf32> to vector<16x8xf32>
      %cst_13 = arith.constant 0.353553385 : f32
      %15 = vector.broadcast %cst_13 : f32 to vector<16x8xf32>
      %16 = arith.mulf %14, %15 : vector<16x8xf32>
      %c0_14 = arith.constant 0 : index
      %c0_15 = arith.constant 0 : index
      %c0_16 = arith.constant 0 : index
      %c0_17 = arith.constant 0 : index
      %17 = vector.load %arg5[%c0_14, %c0_15, %c0_16, %c0_17] : memref<1x4x16x8xf32, #tpu.memory_space<vmem>>, vector<1x1x16x8xf32>
      %18 = vector.shape_cast %17 : vector<1x1x16x8xf32> to vector<16x8xf32>
      %19 = vector.shape_cast %16 : vector<16x8xf32> to vector<1x1x16x8xf32>
      tpu.vector_store %arg5[%c0_14, %c0_15, %c0_16, %c0_17], %19 {strides = array<i32>} : memref<1x4x16x8xf32, #tpu.memory_space<vmem>>, vector<1x1x16x8xf32>,
      %20 = vector.extract_strided_slice %13 {offsets = [0, 32], sizes = [16, 8], strides = [1, 1]} : vector<16x96xf32> to vector<16x8xf32>
      %c0_18 = arith.constant 0 : index
      %c0_19 = arith.constant 0 : index
      %c0_20 = arith.constant 0 : index
      %c0_21 = arith.constant 0 : index
      %21 = vector.load %arg6[%c0_18, %c0_19, %c0_20, %c0_21] : memref<1x4x16x8xf32, #tpu.memory_space<vmem>>, vector<1x1x16x8xf32>
      %22 = vector.shape_cast %21 : vector<1x1x16x8xf32> to vector<16x8xf32>
      %23 = vector.shape_cast %20 : vector<16x8xf32> to vector<1x1x16x8xf32>
      tpu.vector_store %arg6[%c0_18, %c0_19, %c0_20, %c0_21], %23 {strides = array<i32>} : memref<1x4x16x8xf32, #tpu.memory_space<vmem>>, vector<1x1x16x8xf32>,
      %24 = vector.extract_strided_slice %13 {offsets = [0, 64], sizes = [16, 8], strides = [1, 1]} : vector<16x96xf32> to vector<16x8xf32>
      %c0_22 = arith.constant 0 : index
      %c0_23 = arith.constant 0 : index
      %c0_24 = arith.constant 0 : index
      %c0_25 = arith.constant 0 : index
      %25 = vector.load %arg7[%c0_22, %c0_23, %c0_24, %c0_25] : memref<1x4x16x8xf32, #tpu.memory_space<vmem>>, vector<1x1x16x8xf32>
      %26 = vector.shape_cast %25 : vector<1x1x16x8xf32> to vector<16x8xf32>
      %27 = vector.shape_cast %24 : vector<16x8xf32> to vector<1x1x16x8xf32>
      tpu.vector_store %arg7[%c0_22, %c0_23, %c0_24, %c0_25], %27 {strides = array<i32>} : memref<1x4x16x8xf32, #tpu.memory_space<vmem>>, vector<1x1x16x8xf32>,
      %28 = vector.extract_strided_slice %13 {offsets = [0, 8], sizes = [16, 8], strides = [1, 1]} : vector<16x96xf32> to vector<16x8xf32>
      %cst_26 = arith.constant 0.353553385 : f32
      %29 = vector.broadcast %cst_26 : f32 to vector<16x8xf32>
      %30 = arith.mulf %28, %29 : vector<16x8xf32>
      %c0_27 = arith.constant 0 : index
      %c1 = arith.constant 1 : index
      %c0_28 = arith.constant 0 : index
      %c0_29 = arith.constant 0 : index
      %31 = vector.load %arg5[%c0_27, %c1, %c0_28, %c0_29] : memref<1x4x16x8xf32, #tpu.memory_space<vmem>>, vector<1x1x16x8xf32>
      %32 = vector.shape_cast %31 : vector<1x1x16x8xf32> to vector<16x8xf32>
      %33 = vector.shape_cast %30 : vector<16x8xf32> to vector<1x1x16x8xf32>
      tpu.vector_store %arg5[%c0_27, %c1, %c0_28, %c0_29], %33 {strides = array<i32>} : memref<1x4x16x8xf32, #tpu.memory_space<vmem>>, vector<1x1x16x8xf32>,
      %34 = vector.extract_strided_slice %13 {offsets = [0, 40], sizes = [16, 8], strides = [1, 1]} : vector<16x96xf32> to vector<16x8xf32>
      %c0_30 = arith.constant 0 : index
      %c1_31 = arith.constant 1 : index
      %c0_32 = arith.constant 0 : index
      %c0_33 = arith.constant 0 : index
      %35 = vector.load %arg6[%c0_30, %c1_31, %c0_32, %c0_33] : memref<1x4x16x8xf32, #tpu.memory_space<vmem>>, vector<1x1x16x8xf32>
      %36 = vector.shape_cast %35 : vector<1x1x16x8xf32> to vector<16x8xf32>
      %37 = vector.shape_cast %34 : vector<16x8xf32> to vector<1x1x16x8xf32>
      tpu.vector_store %arg6[%c0_30, %c1_31, %c0_32, %c0_33], %37 {strides = array<i32>} : memref<1x4x16x8xf32, #tpu.memory_space<vmem>>, vector<1x1x16x8xf32>,
      %38 = vector.extract_strided_slice %13 {offsets = [0, 72], sizes = [16, 8], strides = [1, 1]} : vector<16x96xf32> to vector<16x8xf32>
      %c0_34 = arith.constant 0 : index
      %c1_35 = arith.constant 1 : index
      %c0_36 = arith.constant 0 : index
      %c0_37 = arith.constant 0 : index
      %39 = vector.load %arg7[%c0_34, %c1_35, %c0_36, %c0_37] : memref<1x4x16x8xf32, #tpu.memory_space<vmem>>, vector<1x1x16x8xf32>
      %40 = vector.shape_cast %39 : vector<1x1x16x8xf32> to vector<16x8xf32>
      %41 = vector.shape_cast %38 : vector<16x8xf32> to vector<1x1x16x8xf32>
      tpu.vector_store %arg7[%c0_34, %c1_35, %c0_36, %c0_37], %41 {strides = array<i32>} : memref<1x4x16x8xf32, #tpu.memory_space<vmem>>, vector<1x1x16x8xf32>,
      %42 = vector.extract_strided_slice %13 {offsets = [0, 16], sizes = [16, 8], strides = [1, 1]} : vector<16x96xf32> to vector<16x8xf32>
      %cst_38 = arith.constant 0.353553385 : f32
      %43 = vector.broadcast %cst_38 : f32 to vector<16x8xf32>
      %44 = arith.mulf %42, %43 : vector<16x8xf32>
      %c0_39 = arith.constant 0 : index
      %c2 = arith.constant 2 : index
      %c0_40 = arith.constant 0 : index
      %c0_41 = arith.constant 0 : index
      %45 = vector.load %arg5[%c0_39, %c2, %c0_40, %c0_41] : memref<1x4x16x8xf32, #tpu.memory_space<vmem>>, vector<1x1x16x8xf32>
      %46 = vector.shape_cast %45 : vector<1x1x16x8xf32> to vector<16x8xf32>
      %47 = vector.shape_cast %44 : vector<16x8xf32> to vector<1x1x16x8xf32>
      tpu.vector_store %arg5[%c0_39, %c2, %c0_40, %c0_41], %47 {strides = array<i32>} : memref<1x4x16x8xf32, #tpu.memory_space<vmem>>, vector<1x1x16x8xf32>,
      %48 = vector.extract_strided_slice %13 {offsets = [0, 48], sizes = [16, 8], strides = [1, 1]} : vector<16x96xf32> to vector<16x8xf32>
      %c0_42 = arith.constant 0 : index
      %c2_43 = arith.constant 2 : index
      %c0_44 = arith.constant 0 : index
      %c0_45 = arith.constant 0 : index
      %49 = vector.load %arg6[%c0_42, %c2_43, %c0_44, %c0_45] : memref<1x4x16x8xf32, #tpu.memory_space<vmem>>, vector<1x1x16x8xf32>
      %50 = vector.shape_cast %49 : vector<1x1x16x8xf32> to vector<16x8xf32>
      %51 = vector.shape_cast %48 : vector<16x8xf32> to vector<1x1x16x8xf32>
      tpu.vector_store %arg6[%c0_42, %c2_43, %c0_44, %c0_45], %51 {strides = array<i32>} : memref<1x4x16x8xf32, #tpu.memory_space<vmem>>, vector<1x1x16x8xf32>,
      %52 = vector.extract_strided_slice %13 {offsets = [0, 80], sizes = [16, 8], strides = [1, 1]} : vector<16x96xf32> to vector<16x8xf32>
      %c0_46 = arith.constant 0 : index
      %c2_47 = arith.constant 2 : index
      %c0_48 = arith.constant 0 : index
      %c0_49 = arith.constant 0 : index
      %53 = vector.load %arg7[%c0_46, %c2_47, %c0_48, %c0_49] : memref<1x4x16x8xf32, #tpu.memory_space<vmem>>, vector<1x1x16x8xf32>
      %54 = vector.shape_cast %53 : vector<1x1x16x8xf32> to vector<16x8xf32>
      %55 = vector.shape_cast %52 : vector<16x8xf32> to vector<1x1x16x8xf32>
      tpu.vector_store %arg7[%c0_46, %c2_47, %c0_48, %c0_49], %55 {strides = array<i32>} : memref<1x4x16x8xf32, #tpu.memory_space<vmem>>, vector<1x1x16x8xf32>,
      %56 = vector.extract_strided_slice %13 {offsets = [0, 24], sizes = [16, 8], strides = [1, 1]} : vector<16x96xf32> to vector<16x8xf32>
      %cst_50 = arith.constant 0.353553385 : f32
      %57 = vector.broadcast %cst_50 : f32 to vector<16x8xf32>
      %58 = arith.mulf %56, %57 : vector<16x8xf32>
      %c0_51 = arith.constant 0 : index
      %c3 = arith.constant 3 : index
      %c0_52 = arith.constant 0 : index
      %c0_53 = arith.constant 0 : index
      %59 = vector.load %arg5[%c0_51, %c3, %c0_52, %c0_53] : memref<1x4x16x8xf32, #tpu.memory_space<vmem>>, vector<1x1x16x8xf32>
      %60 = vector.shape_cast %59 : vector<1x1x16x8xf32> to vector<16x8xf32>
      %61 = vector.shape_cast %58 : vector<16x8xf32> to vector<1x1x16x8xf32>
      tpu.vector_store %arg5[%c0_51, %c3, %c0_52, %c0_53], %61 {strides = array<i32>} : memref<1x4x16x8xf32, #tpu.memory_space<vmem>>, vector<1x1x16x8xf32>,
      %62 = vector.extract_strided_slice %13 {offsets = [0, 56], sizes = [16, 8], strides = [1, 1]} : vector<16x96xf32> to vector<16x8xf32>
      %c0_54 = arith.constant 0 : index
      %c3_55 = arith.constant 3 : index
      %c0_56 = arith.constant 0 : index
      %c0_57 = arith.constant 0 : index
      %63 = vector.load %arg6[%c0_54, %c3_55, %c0_56, %c0_57] : memref<1x4x16x8xf32, #tpu.memory_space<vmem>>, vector<1x1x16x8xf32>
      %64 = vector.shape_cast %63 : vector<1x1x16x8xf32> to vector<16x8xf32>
      %65 = vector.shape_cast %62 : vector<16x8xf32> to vector<1x1x16x8xf32>
      tpu.vector_store %arg6[%c0_54, %c3_55, %c0_56, %c0_57], %65 {strides = array<i32>} : memref<1x4x16x8xf32, #tpu.memory_space<vmem>>, vector<1x1x16x8xf32>,
      %66 = vector.extract_strided_slice %13 {offsets = [0, 88], sizes = [16, 8], strides = [1, 1]} : vector<16x96xf32> to vector<16x8xf32>
      %c0_58 = arith.constant 0 : index
      %c3_59 = arith.constant 3 : index
      %c0_60 = arith.constant 0 : index
      %c0_61 = arith.constant 0 : index
      %67 = vector.load %arg7[%c0_58, %c3_59, %c0_60, %c0_61] : memref<1x4x16x8xf32, #tpu.memory_space<vmem>>, vector<1x1x16x8xf32>
      %68 = vector.shape_cast %67 : vector<1x1x16x8xf32> to vector<16x8xf32>
      %69 = vector.shape_cast %66 : vector<16x8xf32> to vector<1x1x16x8xf32>
      tpu.vector_store %arg7[%c0_58, %c3_59, %c0_60, %c0_61], %69 {strides = array<i32>} : memref<1x4x16x8xf32, #tpu.memory_space<vmem>>, vector<1x1x16x8xf32>,
    } else {
    }
    return
  }
  func.func @transform_0(%arg0: i32, %arg1: i32, %arg2: i32) -> (i32, i32, i32) {
    %c0_i32 = arith.constant 0 : i32
    return %arg0, %arg1, %arg2 : i32, i32, i32
  }
  func.func @transform_1(%arg0: i32, %arg1: i32, %arg2: i32) -> (i32, i32) {
    %c0_i32 = arith.constant 0 : i32
    %c0_i32_0 = arith.constant 0 : i32
    return %arg2, %c0_i32 : i32, i32
  }
  func.func @transform_2(%arg0: i32, %arg1: i32, %arg2: i32) -> (i32, i32, i32, i32) {
    %c0_i32 = arith.constant 0 : i32
    %c0_i32_0 = arith.constant 0 : i32
    %c0_i32_1 = arith.constant 0 : i32
    return %arg0, %c0_i32, %arg1, %c0_i32_0 : i32, i32, i32, i32
  }
  func.func @transform_3(%arg0: i32, %arg1: i32, %arg2: i32) -> (i32, i32, i32, i32) {
    %c0_i32 = arith.constant 0 : i32
    %c0_i32_0 = arith.constant 0 : i32
    %c0_i32_1 = arith.constant 0 : i32
    return %arg0, %c0_i32, %arg1, %c0_i32_0 : i32, i32, i32, i32
  }
  func.func @transform_4(%arg0: i32, %arg1: i32, %arg2: i32) -> (i32, i32, i32, i32) {
    %c0_i32 = arith.constant 0 : i32
    %c0_i32_0 = arith.constant 0 : i32
    %c0_i32_1 = arith.constant 0 : i32
    return %arg0, %c0_i32, %arg1, %c0_i32_0 : i32, i32, i32, i32
  }
}

</mosaic_0001>

<llo_original>
// kernel: tpu_custom_call.1
$region0: #{tpu_custom_call.1}
  #allocation0 [shape = 'u32[]', space=smem, size = 0x4, offset = 0x4, fixed_abs, tag = 'smem constant byte address 0x4 - core index']
  #allocation1 [shape = 'u32[72,128]{1,0:T(1,128)}', space=vmem, size = 0x9000, scoped, tag = 'internal scratch']
  #allocation2 [shape = 'f32[16,96]{1,0:T(8,128)}', space=vmem, size = 0x2000, scoped, tag = 'scratch operand']
  %s0 = inlined_call_operand.hbm [shape: f32[2,16,32], index: 0, kind: input, shape index: {}]
  %s1 = inlined_call_operand.hbm [shape: f32[32,96], index: 1, kind: input, shape index: {}]
  %s2 = inlined_call_operand.vmem [shape: f32[2,4,16,8], index: 2, kind: output, shape index: {0}]
  %s3 = inlined_call_operand.vmem [shape: f32[2,4,16,8], index: 3, kind: output, shape index: {1}]
  %s4 = inlined_call_operand.vmem [shape: f32[2,4,16,8], index: 4, kind: output, shape index: {2}]
  %5 = xla_tuple %s2, %s3, %s4
  %s6 = sld [smem:[#allocation0]]
  $region73: #{tpu_custom_call.1} parent=0
    _
  %s8 = ssub.s32 1, %s6
  %s9 = scalar_select 0, %s8, %s6
  $region1: #{tpu_custom_call.1} parent=0
    #allocation3 [shape = 'u8[16384]{0}', space=vmem, size = 0x4000, scoped, tag = 'input window, operand 0']
    #allocation4 [shape = 's32[2]{0}', space=sflag, size = 0x8, scoped, tag = 'scoped memory for tpu_custom_call.1']
    #allocation5 [shape = 'u8[16384]{0}', space=vmem, size = 0x4000, scoped, tag = 'input window, operand 1, single buffered']
    #allocation6 [shape = 's32[1]{0}', space=sflag, size = 0x4, scoped, tag = 'scoped memory for tpu_custom_call.1']
    %10 = vsyncpa [#allocation4], 0
    %s11 = scalar_lea.sflag [#allocation4], 1
    %12 = vsyncpa %s11, 0
    %13 = vsyncpa [#allocation6], 0
    loop: start=0, step=1, limit=4
    $region2: #{tpu_custom_call.1} parent=1 // loop_pre_header
      _
    $region3: #{tpu_custom_call.1} parent=1 // loop_header
      %s15 = sphi 0, %s19
      %p16 = scmp.ge.s32.totalorder %s15, 4
      %s22 = sphi 0, %s41
      %s23 = sphi 0, %s37
      %s24 = sphi 0, %s33
      %s25 = sphi 0, %s22
      %s26 = sphi 0, %s23
      %s27 = sphi 0, %s24
      %s28 = sphi 0, %s25
      %s29 = sphi 0, %s26
      %s30 = sphi 0, %s27
      %s48 = sphi 0, %s50
      %s51 = sphi 0, %s48
      %s52 = sphi 0, %s51
      %s68 = sphi 0, %s52
      %s74 = sphi 0, %s76
      %s77 = sphi 0, %s74
      %s78 = sphi 0, %s77
      %s94 = sphi 0, %s78
      %s102 = sphi 0, %s104
      %s105 = sphi 0, %s102
      %s106 = sphi 0, %s105
      %s122 = sphi 0, %s106
      %s130 = sphi 0, %s132
      %s133 = sphi 0, %s130
      %s134 = sphi 0, %s133
      %s150 = sphi 0, %s134
      %s158 = sphi 0, %s160
      %s161 = sphi 0, %s158
      %s162 = sphi 0, %s161
      %s178 = sphi 0, %s162
    $region4: #{tpu_custom_call.1} parent=1 // loop_header_branch
      %18 = sbr.rel (%p16) target = $region8
    $region5: #{tpu_custom_call.1} parent=1 // loop_body
      %s20 = ssub.s32 %s15, 1
      %s21 = ssub.s32 %s15, 2
      %s31 = sadd.s32 1, %s24
      %p32 = scmp.ge.s32.totalorder %s31, 1
      %s33 = scalar_select %p32, 0, %s31
      %s34 = sadd.s32 1, %s23
      %s35 = scalar_select %p32, %s34, %s23
      %p36 = scmp.ge.s32.totalorder %s35, 1
      %s37 = scalar_select %p36, 0, %s35
      %s38 = sadd.s32 1, %s22
      %s39 = scalar_select %p36, %s38, %s22
      %p40 = scmp.ge.s32.totalorder %s39, 2
      %s41 = scalar_select %p40, 0, %s39
      %s42 = ssub.s32 %s22, %s41
      %s43 = ssub.s32 %s23, %s37
      %s44 = sor.u32 %s42, %s43
      %s45 = ssub.s32 %s24, %s33
      %s46 = sor.u32 %s44, %s45
      %p47 = scmp.eq.s32.totalorder %s46, 0
      %s49 = sadd.s32 %s48, 1
      %s50 = scalar_select %p47, %s48, %s49
      %p53 = pneg %p47
      %p54 = scmp.eq.s32.totalorder %s15, 1
      %p55 = por %p53, %p54
      %p56 = scmp.ne.s32.totalorder %s48, %s51
      %p57 = scmp.eq.s32.totalorder %s15, 0
      %p58 = por %p56, %p57
      %p59 = scmp.ne.s32.totalorder %s48, %s51
      %p60 = scmp.eq.s32.totalorder %s20, 1
      %p61 = por %p59, %p60
      %p62 = scmp.ne.s32.totalorder %s51, %s52
      %p63 = scmp.eq.s32.totalorder %s20, 0
      %p64 = por %p62, %p63
      %p65 = scmp.ne.s32.totalorder %s51, %s52
      %p66 = scmp.eq.s32.totalorder %s21, 1
      %p67 = por %p65, %p66
      %p69 = scmp.ne.s32.totalorder %s52, %s68
      %p70 = scmp.eq.s32.totalorder %s21, 0
      %p71 = por %p69, %p70
      %s72 = ssub.s32 %s24, %s33
      %p73 = scmp.eq.s32.totalorder %s72, 0
      %s75 = sadd.s32 %s74, 1
      %s76 = scalar_select %p73, %s74, %s75
      %p79 = pneg %p73
      %p80 = scmp.eq.s32.totalorder %s15, 1
      %p81 = por %p79, %p80
      %p82 = scmp.ne.s32.totalorder %s74, %s77
      %p83 = scmp.eq.s32.totalorder %s15, 0
      %p84 = por %p82, %p83
      %p85 = scmp.ne.s32.totalorder %s74, %s77
      %p86 = scmp.eq.s32.totalorder %s20, 1
      %p87 = por %p85, %p86
      %p88 = scmp.ne.s32.totalorder %s77, %s78
      %p89 = scmp.eq.s32.totalorder %s20, 0
      %p90 = por %p88, %p89
      %p91 = scmp.ne.s32.totalorder %s77, %s78
      %p92 = scmp.eq.s32.totalorder %s21, 1
      %p93 = por %p91, %p92
      %p95 = scmp.ne.s32.totalorder %s78, %s94
      %p96 = scmp.eq.s32.totalorder %s21, 0
      %p97 = por %p95, %p96
      %s98 = ssub.s32 %s22, %s41
      %s99 = ssub.s32 %s23, %s37
      %s100 = sor.u32 %s98, %s99
      %p101 = scmp.eq.s32.totalorder %s100, 0
      %s103 = sadd.s32 %s102, 1
      %s104 = scalar_select %p101, %s102, %s103
      %p107 = pneg %p101
      %p108 = scmp.eq.s32.totalorder %s15, 1
      %p109 = por %p107, %p108
      %p110 = scmp.ne.s32.totalorder %s102, %s105
      %p111 = scmp.eq.s32.totalorder %s15, 0
      %p112 = por %p110, %p111
      %p113 = scmp.ne.s32.totalorder %s102, %s105
      %p114 = scmp.eq.s32.totalorder %s20, 1
      %p115 = por %p113, %p114
      %p116 = scmp.ne.s32.totalorder %s105, %s106
      %p117 = scmp.eq.s32.totalorder %s20, 0
      %p118 = por %p116, %p117
      %p119 = scmp.ne.s32.totalorder %s105, %s106
      %p120 = scmp.eq.s32.totalorder %s21, 1
      %p121 = por %p119, %p120
      %p123 = scmp.ne.s32.totalorder %s106, %s122
      %p124 = scmp.eq.s32.totalorder %s21, 0
      %p125 = por %p123, %p124
      %s126 = ssub.s32 %s22, %s41
      %s127 = ssub.s32 %s23, %s37
      %s128 = sor.u32 %s126, %s127
      %p129 = scmp.eq.s32.totalorder %s128, 0
      %s131 = sadd.s32 %s130, 1
      %s132 = scalar_select %p129, %s130, %s131
      %p135 = pneg %p129
      %p136 = scmp.eq.s32.totalorder %s15, 1
      %p137 = por %p135, %p136
      %p138 = scmp.ne.s32.totalorder %s130, %s133
      %p139 = scmp.eq.s32.totalorder %s15, 0
      %p140 = por %p138, %p139
      %p141 = scmp.ne.s32.totalorder %s130, %s133
      %p142 = scmp.eq.s32.totalorder %s20, 1
      %p143 = por %p141, %p142
      %p144 = scmp.ne.s32.totalorder %s133, %s134
      %p145 = scmp.eq.s32.totalorder %s20, 0
      %p146 = por %p144, %p145
      %p147 = scmp.ne.s32.totalorder %s133, %s134
      %p148 = scmp.eq.s32.totalorder %s21, 1
      %p149 = por %p147, %p148
      %p151 = scmp.ne.s32.totalorder %s134, %s150
      %p152 = scmp.eq.s32.totalorder %s21, 0
      %p153 = por %p151, %p152
      %s154 = ssub.s32 %s22, %s41
      %s155 = ssub.s32 %s23, %s37
      %s156 = sor.u32 %s154, %s155
      %p157 = scmp.eq.s32.totalorder %s156, 0
      %s159 = sadd.s32 %s158, 1
      %s160 = scalar_select %p157, %s158, %s159
      %p163 = pneg %p157
      %p164 = scmp.eq.s32.totalorder %s15, 1
      %p165 = por %p163, %p164
      %p166 = scmp.ne.s32.totalorder %s158, %s161
      %p167 = scmp.eq.s32.totalorder %s15, 0
      %p168 = por %p166, %p167
      %p169 = scmp.ne.s32.totalorder %s158, %s161
      %p170 = scmp.eq.s32.totalorder %s20, 1
      %p171 = por %p169, %p170
      %p172 = scmp.ne.s32.totalorder %s161, %s162
      %p173 = scmp.eq.s32.totalorder %s20, 0
      %p174 = por %p172, %p173
      %p175 = scmp.ne.s32.totalorder %s161, %s162
      %p176 = scmp.eq.s32.totalorder %s21, 1
      %p177 = por %p175, %p176
      %p179 = scmp.ne.s32.totalorder %s162, %s178
      %p180 = scmp.eq.s32.totalorder %s21, 0
      %p181 = por %p179, %p180
      %p182 = scmp.le.s32.totalorder 1, %s15
      %p183 = scmp.lt.s32.totalorder %s15, 3
      %p184 = pnand %p182, %p183
      %p185 = pneg %p184
      // Predicated region
      $region9: #{tpu_custom_call.1} parent=5 // pred_check
        _
      $region10: #{tpu_custom_call.1} parent=5 // pred_check_branch
        %187 = sbr.rel (%p184) target = $region12
      $region11: #{tpu_custom_call.1} parent=5 // pred_region
        %s188 = ssub.s32 %s15, 1
        // Predicated region
        $region13: #{tpu_custom_call.1} parent=11 // pred_check
          %p189 = pneg %p90
        $region14: #{tpu_custom_call.1} parent=11 // pred_check_branch
          %191 = sbr.rel (%p189) target = $region16
        $region15: #{tpu_custom_call.1} parent=11 // pred_region
          %s192 = smul.u32 4, %s27
          %194 = vsyncadd [#allocation6], 0
          %s195 = smul.addr %s192, 8
          %s196 = scalar_lea.hbm %s1, %s195
          %s197 = sshll.u32 %s196, 4
          %s198 = int_to_ptr.hbm [resolvable:$true] %s197
          %s199 = sshll.u32 [#allocation5], 4
          %s200 = int_to_ptr.vmem [resolvable:$true] %s199
          %205 = dma.hbm_to_vmem [thread:$0]  %s198, 512, %s200, [#allocation6], 128, 128, 8
        $region16: #{tpu_custom_call.1} parent=11 // pred_fallthru
          _
      $region12: #{tpu_custom_call.1} parent=5 // pred_fallthru
        _
      %p206 = scmp.lt.s32.totalorder %s15, 2
      // Predicated region
      $region17: #{tpu_custom_call.1} parent=5 // pred_check
        %p207 = pneg %p206
      $region18: #{tpu_custom_call.1} parent=5 // pred_check_branch
        %209 = sbr.rel (%p207) target = $region20
      $region19: #{tpu_custom_call.1} parent=5 // pred_region
        // Predicated region
        $region21: #{tpu_custom_call.1} parent=19 // pred_check
          %p210 = pneg %p58
        $region22: #{tpu_custom_call.1} parent=19 // pred_check_branch
          %212 = sbr.rel (%p210) target = $region24
        $region23: #{tpu_custom_call.1} parent=19 // pred_region
          %s213 = sand.u32 %s48, 1
          %s214 = scalar_lea.sflag [#allocation4], %s213
          %s215 = sand.u32 %s48, 1
          %s216 = smul.addr %s215, 16
          %s217 = scalar_lea.vmem [#allocation3], %s216
          %s218 = smul.u32 2, %s23
          %220 = vsyncadd %s214, 0
          %s221 = sadd.s32 %s24, %s218
          %s222 = smul.addr %s22, 2
          %s223 = sadd.s32 %s221, %s222
          %s224 = smul.addr %s223, 8
          %s225 = scalar_lea.hbm %s0, %s224
          %s226 = sshll.u32 %s225, 4
          %s227 = int_to_ptr.hbm [resolvable:$true] %s226
          %s228 = sshll.u32 %s217, 4
          %s229 = int_to_ptr.vmem [resolvable:$true] %s228
          %234 = dma.hbm_to_vmem [thread:$0]  %s227, 256, %s229, %s214, 128, 128, 8
        $region24: #{tpu_custom_call.1} parent=19 // pred_fallthru
          _
      $region20: #{tpu_custom_call.1} parent=5 // pred_fallthru
        _
      %p235 = scmp.le.s32.totalorder 1, %s15
      %p236 = scmp.lt.s32.totalorder %s15, 3
      %p237 = pnand %p235, %p236
      %p238 = pneg %p237
      // Predicated region
      $region25: #{tpu_custom_call.1} parent=5 // pred_check
        _
      $region26: #{tpu_custom_call.1} parent=5 // pred_check_branch
        %240 = sbr.rel (%p237) target = $region28
      $region27: #{tpu_custom_call.1} parent=5 // pred_region
        %s241 = ssub.s32 %s15, 1
        %s242 = sand.u32 %s51, 1
        %s243 = scalar_lea.sflag [#allocation4], %s242
        %s244 = sand.u32 %s51, 1
        %s245 = smul.addr %s244, 16
        %s246 = scalar_lea.vmem [#allocation3], %s245
        // Predicated region
        $region29: #{tpu_custom_call.1} parent=27 // pred_check
          %p247 = pneg %p64
        $region30: #{tpu_custom_call.1} parent=27 // pred_check_branch
          %249 = sbr.rel (%p247) target = $region32
        $region31: #{tpu_custom_call.1} parent=27 // pred_region
          %251 = dma.done %s243, 256
        $region32: #{tpu_custom_call.1} parent=27 // pred_fallthru
          _
        // Predicated region
        $region33: #{tpu_custom_call.1} parent=27 // pred_check
          %p252 = pneg %p90
        $region34: #{tpu_custom_call.1} parent=27 // pred_check_branch
          %254 = sbr.rel (%p252) target = $region36
        $region35: #{tpu_custom_call.1} parent=27 // pred_region
          %256 = dma.done [#allocation6], 512
        $region36: #{tpu_custom_call.1} parent=27 // pred_fallthru
          _
        %s257 = sand.u32 %s51, 1
        %s258 = scalar_lea.sflag [#allocation4], %s257
        %s259 = sand.u32 %s51, 1
        %s260 = smul.addr %s259, 16
        %s261 = scalar_lea.vmem [#allocation3], %s260
        %p262 = pneg %p64
        %p263 = pneg %p61
        %p264 = pneg %p90
        %p265 = pneg %p87
        %p266 = pneg %p118
        %p267 = pneg %p115
        %s268 = smul.u32 2, %s26
        %p269 = scmp.lt.s32.totalorder %s25, 1
        %s270 = scalar_select %p269, %s25, 1
        %p271 = scmp.lt.s32.totalorder %s268, 1
        %s272 = scalar_select %p271, %s268, 1
        %s273 = smul.addr %s270, 8
        %s274 = sadd.s32 %s272, %s273
        %s275 = smul.addr %s274, 8
        %s276 = scalar_lea.vmem %s2, %s275
        %p277 = pneg %p146
        %p278 = pneg %p143
        %s279 = smul.u32 2, %s26
        %p280 = scmp.lt.s32.totalorder %s25, 1
        %s281 = scalar_select %p280, %s25, 1
        %p282 = scmp.lt.s32.totalorder %s279, 1
        %s283 = scalar_select %p282, %s279, 1
        %s284 = smul.addr %s281, 8
        %s285 = sadd.s32 %s283, %s284
        %s286 = smul.addr %s285, 8
        %s287 = scalar_lea.vmem %s3, %s286
        %p288 = pneg %p174
        %p289 = pneg %p171
        %s290 = smul.u32 2, %s26
        %p291 = scmp.lt.s32.totalorder %s25, 1
        %s292 = scalar_select %p291, %s25, 1
        %p293 = scmp.lt.s32.totalorder %s290, 1
        %s294 = scalar_select %p293, %s290, 1
        %s295 = smul.addr %s292, 8
        %s296 = sadd.s32 %s294, %s295
        %s297 = smul.addr %s296, 8
        %s298 = scalar_lea.vmem %s4, %s297
        %s299 = smul.u32 2, %s26
        %s300 = smul.u32 4, %s27
        %s301 = smul.u32 2, %s26
        %p302 = scmp.lt.s32.totalorder %s25, 1
        %s303 = scalar_select %p302, %s25, 1
        %p304 = scmp.lt.s32.totalorder %s301, 1
        %s305 = scalar_select %p304, %s301, 1
        %s306 = smul.addr %s303, 8
        %s307 = sadd.s32 %s305, %s306
        %s308 = smul.addr %s307, 8
        %s309 = scalar_lea.vmem %s2, %s308
        %s310 = smul.u32 2, %s26
        %s311 = smul.u32 2, %s26
        %p312 = scmp.lt.s32.totalorder %s25, 1
        %s313 = scalar_select %p312, %s25, 1
        %p314 = scmp.lt.s32.totalorder %s311, 1
        %s315 = scalar_select %p314, %s311, 1
        %s316 = smul.addr %s313, 8
        %s317 = sadd.s32 %s315, %s316
        %s318 = smul.addr %s317, 8
        %s319 = scalar_lea.vmem %s3, %s318
        %s320 = smul.u32 2, %s26
        %s321 = smul.u32 2, %s26
        %p322 = scmp.lt.s32.totalorder %s25, 1
        %s323 = scalar_select %p322, %s25, 1
        %p324 = scmp.lt.s32.totalorder %s321, 1
        %s325 = scalar_select %p324, %s321, 1
        %s326 = smul.addr %s323, 8
        %s327 = sadd.s32 %s325, %s326
        %s328 = smul.addr %s327, 8
        %s329 = scalar_lea.vmem %s4, %s328
        %s330 = smul.u32 2, %s26
        %p331 = scmp.eq.s32.totalorder %s27, 0
        // Predicated region
        $region37: #{tpu_custom_call.1} parent=27 // pred_check
          %p332 = pneg %p331
        $region38: #{tpu_custom_call.1} parent=27 // pred_check_branch
          %334 = sbr.rel (%p332) target = $region40
        $region39: #{tpu_custom_call.1} parent=27 // pred_region
          %vm335 = vcmask 785408
          %336 = vst.msk [vmem:[#allocation2] sm:$0xff] %vm335, 0.0
          %337 = vst.msk [vmem:[#allocation2 + $0x8] sm:$0xff] %vm335, 0.0
        $region40: #{tpu_custom_call.1} parent=27 // pred_fallthru
          _
        %v338 = vld [vmem:[%s246] sm:$0xff]
        %v339 = vld [vmem:[%s246 + $0x8] sm:$0xff]
        %v340 = vld [vmem:[#allocation5] sm:$0xff]
        %v341 = vld [vmem:[#allocation5 + $0x8] sm:$0xff]
        %v342 = vld [vmem:[#allocation5 + $0x10] sm:$0xff]
        %v343 = vld [vmem:[#allocation5 + $0x18] sm:$0xff]
        %v344 = vld [vmem:[#allocation2] sm:$0xff]
        %v345 = vld [vmem:[#allocation2 + $0x8] sm:$0xff]
        %vm346 = vcmask 261120
        %v348 = vsel %vm346, %v338, 0
        %v351 = vsel %vm346, %v339, 0
        %353 = vmatpush.msra.mxu0 0.0
        %354 = vmatpush.msra.mxu0 0.0
        %355 = vmatpush.msra.mxu0 0.0
        %356 = vmatpush.msra.mxu0 0.0
        %357 = vmatpush.msra.mxu0 0.0
        %358 = vmatpush.msra.mxu0 0.0
        %359 = vmatpush.msra.mxu0 0.0
        %360 = vmatpush.msra.mxu0 0.0
        %361 = vmatpush.msra.mxu0 0.0
        %362 = vmatpush.msra.mxu0 0.0
        %363 = vmatpush.msra.mxu0 0.0
        %364 = vmatpush.msra.mxu0 0.0
        %365 = vmatpush.msra.mxu0 %v343
        %366 = vmatpush.msra.mxu0 %v342
        %367 = vmatpush.msra.mxu0 %v341
        %368 = vmatpush.msra.mxu0 %v340
        %369 = vmatmul.f32.gmra.mxu0 %v348
        %v370 = vpop.f32.mrf.mxu0
        %v371 = vadd.f32 0.0, %v370
        %372 = vmatmul.f32.gmra.mxu0 %v351
        %v373 = vpop.f32.mrf.mxu0
        %v374 = vadd.f32 0.0, %v373
        %375 = vdwg.mxu0
        %v376 = vadd.f32 %v344, %v371
        %v377 = vadd.f32 %v345, %v374
        %vm378 = vcmask 785408
        %379 = vst.msk [vmem:[#allocation2] sm:$0xff] %vm378, %v376
        %380 = vst.msk [vmem:[#allocation2 + $0x8] sm:$0xff] %vm378, %v377
        // Predicated region
        $region41: #{tpu_custom_call.1} parent=27 // pred_check
          %p381 = pneg %p331
        $region42: #{tpu_custom_call.1} parent=27 // pred_check_branch
          %383 = sbr.rel (%p381) target = $region44
        $region43: #{tpu_custom_call.1} parent=27 // pred_region
          %v384 = vld [vmem:[#allocation2] sm:$0xff]
          %v385 = vld [vmem:[#allocation2 + $0x8] sm:$0xff]
          %v386 = vmul.f32 %v384, 0.35355338
          %v387 = vmul.f32 %v385, 0.35355338
          %vm388 = vcmask 64512
          %389 = vst.msk [vmem:[%s309] sm:$0xff] %vm388, %v386
          %390 = vst.msk [vmem:[%s309 + $0x8] sm:$0xff] %vm388, %v387
          %393 = vrot.lane.b32.xlu0 %v384, 96
          %v394 = vpop.permute.xlu0 %393
          %395 = vrot.lane.b32.xlu0 %v385, 96
          %v396 = vpop.permute.xlu0 %395
          %399 = vst.msk [vmem:[%s319] sm:$0xff] %vm388, %v394
          %400 = vst.msk [vmem:[%s319 + $0x8] sm:$0xff] %vm388, %v396
          %401 = vrot.lane.b32.xlu0 %v384, 64
          %v402 = vpop.permute.xlu0 %401
          %403 = vrot.lane.b32.xlu0 %v385, 64
          %v404 = vpop.permute.xlu0 %403
          %407 = vst.msk [vmem:[%s329] sm:$0xff] %vm388, %v402
          %408 = vst.msk [vmem:[%s329 + $0x8] sm:$0xff] %vm388, %v404
          %411 = vrot.lane.b32.xlu0 %v386, 120
          %v412 = vpop.permute.xlu0 %411
          %413 = vrot.lane.b32.xlu0 %v387, 120
          %v414 = vpop.permute.xlu0 %413
          %s417 = scalar_lea.vmem %s309, 16
          %418 = vst.msk [vmem:[%s417] sm:$0xff] %vm388, %v412
          %419 = vst.msk [vmem:[%s417 + $0x8] sm:$0xff] %vm388, %v414
          %420 = vrot.lane.b32.xlu0 %v384, 88
          %v421 = vpop.permute.xlu0 %420
          %422 = vrot.lane.b32.xlu0 %v385, 88
          %v423 = vpop.permute.xlu0 %422
          %s426 = scalar_lea.vmem %s319, 16
          %427 = vst.msk [vmem:[%s426] sm:$0xff] %vm388, %v421
          %428 = vst.msk [vmem:[%s426 + $0x8] sm:$0xff] %vm388, %v423
          %429 = vrot.lane.b32.xlu0 %v384, 56
          %v430 = vpop.permute.xlu0 %429
          %431 = vrot.lane.b32.xlu0 %v385, 56
          %v432 = vpop.permute.xlu0 %431
          %s435 = scalar_lea.vmem %s329, 16
          %436 = vst.msk [vmem:[%s435] sm:$0xff] %vm388, %v430
          %437 = vst.msk [vmem:[%s435 + $0x8] sm:$0xff] %vm388, %v432
          %438 = vrot.lane.b32.xlu0 %v386, 112
          %v439 = vpop.permute.xlu0 %438
          %440 = vrot.lane.b32.xlu0 %v387, 112
          %v441 = vpop.permute.xlu0 %440
          %s444 = scalar_lea.vmem %s309, 32
          %445 = vst.msk [vmem:[%s444] sm:$0xff] %vm388, %v439
          %446 = vst.msk [vmem:[%s444 + $0x8] sm:$0xff] %vm388, %v441
          %447 = vrot.lane.b32.xlu0 %v384, 80
          %v448 = vpop.permute.xlu0 %447
          %449 = vrot.lane.b32.xlu0 %v385, 80
          %v450 = vpop.permute.xlu0 %449
          %s453 = scalar_lea.vmem %s319, 32
          %454 = vst.msk [vmem:[%s453] sm:$0xff] %vm388, %v448
          %455 = vst.msk [vmem:[%s453 + $0x8] sm:$0xff] %vm388, %v450
          %456 = vrot.lane.b32.xlu0 %v384, 48
          %v457 = vpop.permute.xlu0 %456
          %458 = vrot.lane.b32.xlu0 %v385, 48
          %v459 = vpop.permute.xlu0 %458
          %s462 = scalar_lea.vmem %s329, 32
          %463 = vst.msk [vmem:[%s462] sm:$0xff] %vm388, %v457
          %464 = vst.msk [vmem:[%s462 + $0x8] sm:$0xff] %vm388, %v459
          %465 = vrot.lane.b32.xlu0 %v386, 104
          %v466 = vpop.permute.xlu0 %465
          %467 = vrot.lane.b32.xlu0 %v387, 104
          %v468 = vpop.permute.xlu0 %467
          %s471 = scalar_lea.vmem %s309, 48
          %472 = vst.msk [vmem:[%s471] sm:$0xff] %vm388, %v466
          %473 = vst.msk [vmem:[%s471 + $0x8] sm:$0xff] %vm388, %v468
          %474 = vrot.lane.b32.xlu0 %v384, 72
          %v475 = vpop.permute.xlu0 %474
          %476 = vrot.lane.b32.xlu0 %v385, 72
          %v477 = vpop.permute.xlu0 %476
          %s480 = scalar_lea.vmem %s319, 48
          %481 = vst.msk [vmem:[%s480] sm:$0xff] %vm388, %v475
          %482 = vst.msk [vmem:[%s480 + $0x8] sm:$0xff] %vm388, %v477
          %483 = vrot.lane.b32.xlu0 %v384, 40
          %v484 = vpop.permute.xlu0 %483
          %485 = vrot.lane.b32.xlu0 %v385, 40
          %v486 = vpop.permute.xlu0 %485
          %s489 = scalar_lea.vmem %s329, 48
          %490 = vst.msk [vmem:[%s489] sm:$0xff] %vm388, %v484
          %491 = vst.msk [vmem:[%s489 + $0x8] sm:$0xff] %vm388, %v486
        $region44: #{tpu_custom_call.1} parent=27 // pred_fallthru
          _
        %s492 = smul.u32 2, %s26
        %p493 = scmp.lt.s32.totalorder %s25, 1
        %s494 = scalar_select %p493, %s25, 1
        %p495 = scmp.lt.s32.totalorder %s492, 1
        %s496 = scalar_select %p495, %s492, 1
        %s497 = smul.addr %s494, 8
        %s498 = sadd.s32 %s496, %s497
        %s499 = smul.addr %s498, 8
        %s500 = scalar_lea.vmem %s2, %s499
        %s501 = smul.u32 2, %s26
        %p502 = scmp.lt.s32.totalorder %s25, 1
        %s503 = scalar_select %p502, %s25, 1
        %p504 = scmp.lt.s32.totalorder %s501, 1
        %s505 = scalar_select %p504, %s501, 1
        %s506 = smul.addr %s503, 8
        %s507 = sadd.s32 %s505, %s506
        %s508 = smul.addr %s507, 8
        %s509 = scalar_lea.vmem %s3, %s508
        %s510 = smul.u32 2, %s26
        %p511 = scmp.lt.s32.totalorder %s25, 1
        %s512 = scalar_select %p511, %s25, 1
        %p513 = scmp.lt.s32.totalorder %s510, 1
        %s514 = scalar_select %p513, %s510, 1
        %s515 = smul.addr %s512, 8
        %s516 = sadd.s32 %s514, %s515
        %s517 = smul.addr %s516, 8
        %s518 = scalar_lea.vmem %s4, %s517
        // Predicated region
        $region45: #{tpu_custom_call.1} parent=27 // pred_check
          %p519 = pneg %p115
        $region46: #{tpu_custom_call.1} parent=27 // pred_check_branch
          %521 = sbr.rel (%p519) target = $region48
        $region47: #{tpu_custom_call.1} parent=27 // pred_region
          %s522 = smul.u32 2, %s26
        $region48: #{tpu_custom_call.1} parent=27 // pred_fallthru
          _
        // Predicated region
        $region49: #{tpu_custom_call.1} parent=27 // pred_check
          %p523 = pneg %p143
        $region50: #{tpu_custom_call.1} parent=27 // pred_check_branch
          %525 = sbr.rel (%p523) target = $region52
        $region51: #{tpu_custom_call.1} parent=27 // pred_region
          %s526 = smul.u32 2, %s26
        $region52: #{tpu_custom_call.1} parent=27 // pred_fallthru
          _
        // Predicated region
        $region53: #{tpu_custom_call.1} parent=27 // pred_check
          %p527 = pneg %p171
        $region54: #{tpu_custom_call.1} parent=27 // pred_check_branch
          %529 = sbr.rel (%p527) target = $region56
        $region55: #{tpu_custom_call.1} parent=27 // pred_region
          %s530 = smul.u32 2, %s26
        $region56: #{tpu_custom_call.1} parent=27 // pred_fallthru
          _
      $region28: #{tpu_custom_call.1} parent=5 // pred_fallthru
        _
      %p531 = scmp.le.s32.totalorder 2, %s15
      // Predicated region
      $region57: #{tpu_custom_call.1} parent=5 // pred_check
        %p532 = pneg %p531
      $region58: #{tpu_custom_call.1} parent=5 // pred_check_branch
        %534 = sbr.rel (%p532) target = $region60
      $region59: #{tpu_custom_call.1} parent=5 // pred_region
        %s535 = ssub.s32 %s15, 2
        // Predicated region
        $region61: #{tpu_custom_call.1} parent=59 // pred_check
          %p536 = pneg %p121
        $region62: #{tpu_custom_call.1} parent=59 // pred_check_branch
          %538 = sbr.rel (%p536) target = $region64
        $region63: #{tpu_custom_call.1} parent=59 // pred_region
          %s539 = smul.u32 2, %s29
          %p540 = scmp.lt.s32.totalorder %s28, 1
          %s541 = scalar_select %p540, %s28, 1
          %p542 = scmp.lt.s32.totalorder %s539, 1
          %s543 = scalar_select %p542, %s539, 1
          %s544 = smul.addr %s541, 8
          %s545 = sadd.s32 %s543, %s544
          %s546 = smul.addr %s545, 8
          %s547 = scalar_lea.vmem %s2, %s546
        $region64: #{tpu_custom_call.1} parent=59 // pred_fallthru
          _
        // Predicated region
        $region65: #{tpu_custom_call.1} parent=59 // pred_check
          %p548 = pneg %p149
        $region66: #{tpu_custom_call.1} parent=59 // pred_check_branch
          %550 = sbr.rel (%p548) target = $region68
        $region67: #{tpu_custom_call.1} parent=59 // pred_region
          %s551 = smul.u32 2, %s29
          %p552 = scmp.lt.s32.totalorder %s28, 1
          %s553 = scalar_select %p552, %s28, 1
          %p554 = scmp.lt.s32.totalorder %s551, 1
          %s555 = scalar_select %p554, %s551, 1
          %s556 = smul.addr %s553, 8
          %s557 = sadd.s32 %s555, %s556
          %s558 = smul.addr %s557, 8
          %s559 = scalar_lea.vmem %s3, %s558
        $region68: #{tpu_custom_call.1} parent=59 // pred_fallthru
          _
        // Predicated region
        $region69: #{tpu_custom_call.1} parent=59 // pred_check
          %p560 = pneg %p177
        $region70: #{tpu_custom_call.1} parent=59 // pred_check_branch
          %562 = sbr.rel (%p560) target = $region72
        $region71: #{tpu_custom_call.1} parent=59 // pred_region
          %s563 = smul.u32 2, %s29
          %p564 = scmp.lt.s32.totalorder %s28, 1
          %s565 = scalar_select %p564, %s28, 1
          %p566 = scmp.lt.s32.totalorder %s563, 1
          %s567 = scalar_select %p566, %s563, 1
          %s568 = smul.addr %s565, 8
          %s569 = sadd.s32 %s567, %s568
          %s570 = smul.addr %s569, 8
          %s571 = scalar_lea.vmem %s4, %s570
        $region72: #{tpu_custom_call.1} parent=59 // pred_fallthru
          _
      $region60: #{tpu_custom_call.1} parent=5 // pred_fallthru
        _
    $region6: #{tpu_custom_call.1} parent=1 // loop_footer
      %s19 = sadd.s32 1, %s15
    $region7: #{tpu_custom_call.1} parent=1 // loop_footer_branch
      %14 = sbr.rel target = $region3
    $region8: #{tpu_custom_call.1} parent=1 // loop_exit
      _
    %572 = vsyncpa [#allocation4], 1
    %s573 = scalar_lea.sflag [#allocation4], 1
    %574 = vsyncpa %s573, 1
    %575 = vsyncpa [#allocation6], 1

</llo_original>
